<compile_context>
chip_gen: v7x
topology: tpu7x:2x2x1
jax: 0.10.0
libtpu: 0.0.40
codegen_flags: <defaults>
</compile_context>

<pallas_src>
import jax
import jax.numpy as jnp
from jax.experimental import pallas as pl
from jax.experimental.pallas import tpu as pltpu


def _reg_l1_kernel(idx_ref, fmap_ref, mask_ref, tgt_ref, out_ref, acc_ref):
    t = pl.program_id(1)
    num_tiles = pl.num_programs(1)
    hw_tile = fmap_ref.shape[2]

    @pl.when(t == 0)
    def _():
        acc_ref[...] = jnp.zeros_like(acc_ref)

    # ---- gather chunk: acc[c, k] += sum_j fmap[c, j] * (index[k] == t*hw_tile + j)
    # One-hot is lane-dense (hw_tile on the 128-lane axis); no (K, HW) iota is
    # ever materialized — the (1, hw_tile) iota broadcasts against (Kp, 1) idx.
    idx = idx_ref[0]                                                  # (Kp, 1) int32
    local = idx - t * hw_tile                                         # (Kp, 1)
    hw_iota = jax.lax.broadcasted_iota(jnp.int32, (1, hw_tile), 1)    # (1, hw_tile)
    onehot = (hw_iota == local).astype(fmap_ref.dtype)                # (Kp, hw_tile), exact 0/1
    acc_ref[...] += jax.lax.dot_general(
        fmap_ref[0], onehot,                                          # (C, hw_tile) x (Kp, hw_tile)
        dimension_numbers=(((1,), (1,)), ((), ())),
        preferred_element_type=jnp.float32)                           # -> (C, Kp) f32

    @pl.when(t == num_tiles - 1)
    def _():
        # Masked L1 partials, lane-dense on Kp.  mask factors out of the
        # difference, so |pred*m - tgt*m| == |pred - tgt| * m  (m >= 0).
        m = mask_ref[0].astype(jnp.float32)                           # (1, Kp)
        tgt = tgt_ref[0].astype(jnp.float32)                          # (C, Kp)
        diff = jnp.abs(acc_ref[...] - tgt) * m                        # (C, Kp)
        out_ref[0] = jnp.sum(diff, axis=0, keepdims=True)             # (1, Kp) lane-dense


def _pick_hw_tile(HW, max_tile=2048):
    """Largest multiple-of-128 divisor of HW that is <= max_tile (or HW itself)."""
    if HW <= max_tile or HW % 128 != 0:
        return HW
    for cand in range(max_tile, 0, -128):
        if HW % cand == 0:
            return cand
    return HW


def reg_l1_loss(output, mask, index, target, *, hw_tile=None):
    """output: (N, C, H, W); mask: (N, K); index: (N, K) int; target: (N, K, C)."""
    N, C, H, W = output.shape
    K = index.shape[1]
    HW = H * W

    if hw_tile is None:
        hw_tile = _pick_hw_tile(HW)
    assert HW % hw_tile == 0
    num_tiles = HW // hw_tile

    # Pad K up to a multiple of 128 lanes (zero mask -> padded entries
    # contribute nothing to the loss; loss stays exact).
    Kp = max(128, ((K + 127) // 128) * 128)

    # Free reshape only (no transpose, no upcast) for the large operand.
    fmap = output.reshape(N, C, HW)                       # (N, C, HW), native dtype
    idx = index.astype(jnp.int32)
    msk = mask.astype(jnp.float32)
    tgt = target
    if Kp != K:
        idx = jnp.pad(idx, ((0, 0), (0, Kp - K)))
        msk_p = jnp.pad(msk, ((0, 0), (0, Kp - K)))
        tgt = jnp.pad(tgt, ((0, 0), (0, Kp - K), (0, 0)))
    else:
        msk_p = msk
    idx = idx.reshape(N, Kp, 1)                           # (N, Kp, 1)
    msk_in = msk_p.reshape(N, 1, Kp)                      # (N, 1, Kp)
    tgt_t = jnp.transpose(tgt, (0, 2, 1))                 # (N, C, Kp), tiny transpose

    partials = pl.pallas_call(
        _reg_l1_kernel,
        out_shape=jax.ShapeDtypeStruct((N, 1, Kp), jnp.float32),
        grid_spec=pltpu.PrefetchScalarGridSpec(
            num_scalar_prefetch=0,
            grid=(N, num_tiles),
            in_specs=[
                pl.BlockSpec((1, Kp, 1), lambda n, t: (n, 0, 0)),        # index
                pl.BlockSpec((1, C, hw_tile), lambda n, t: (n, 0, t)),   # fmap chunk
                pl.BlockSpec((1, 1, Kp), lambda n, t: (n, 0, 0)),        # mask
                pl.BlockSpec((1, C, Kp), lambda n, t: (n, 0, 0)),        # target^T
            ],
            out_specs=pl.BlockSpec((1, 1, Kp), lambda n, t: (n, 0, 0)),  # per-batch partials
            scratch_shapes=[pltpu.VMEM((C, Kp), jnp.float32)],           # pred accumulator
        ),
        compiler_params=pltpu.CompilerParams(
            dimension_semantics=("parallel", "arbitrary"),
            vmem_limit_bytes=32 * 1024 * 1024),
    )(idx, fmap, msk_in, tgt_t)

    # Final reduction + normalization in plain JAX.  Denominator is computed
    # here (den == sum of mask expanded to (N, K, C) == C * sum(mask)).
    num = jnp.sum(partials)
    den = C * jnp.sum(msk)
    return num / (den + 0.0001)


def _reference_loss(output, mask, index, target):
    N, C, H, W = output.shape
    K = index.shape[1]
    fmap = jnp.transpose(output.reshape(N, C, H * W), (0, 2, 1))
    gidx = jnp.broadcast_to(index[:, :, None].astype(jnp.int32), (N, K, C))
    pred = jnp.take_along_axis(fmap, gidx, axis=1)
    m = jnp.broadcast_to(mask[:, :, None].astype(jnp.float32), pred.shape)
    loss = jnp.sum(jnp.abs(pred * m - target * m))
    return loss / (jnp.sum(m) + 0.0001)


if __name__ == "__main__":
    key = jax.random.PRNGKey(0)
    k1, k2, k3, k4 = jax.random.split(key, 4)

    N, C, H, W, K = 2, 4, 16, 16, 8

    output = jax.random.normal(k1, (N, C, H, W), dtype=jnp.float32)
    index = jax.random.randint(k2, (N, K), 0, H * W, dtype=jnp.int32)
    mask = (jax.random.uniform(k3, (N, K)) > 0.3).astype(jnp.float32)
    target = jax.random.normal(k4, (N, K, C), dtype=jnp.float32)

    ref = _reference_loss(output, mask, index, target)

    # Default (single HW tile at this size).
    loss = reg_l1_loss(output, mask, index, target)
    jax.block_until_ready(loss)
    assert jnp.allclose(loss, ref, rtol=1e-5, atol=1e-5), (loss, ref)

    # Exercise the HW-tiled accumulator path (2 tiles of 128).
    loss_tiled = reg_l1_loss(output, mask, index, target, hw_tile=128)
    jax.block_until_ready(loss_tiled)
    assert jnp.allclose(loss_tiled, ref, rtol=1e-5, atol=1e-5), (loss_tiled, ref)

    print("KERNEL_OK")
</pallas_src>

<mosaic_0001>
module attributes {stable_mosaic.version = 11 : i64} {
  func.func @_reg_l1_kernel(%arg0: i32, %arg1: i32, %arg2: memref<1x128x1xi32, #tpu.memory_space<vmem>>, %arg3: memref<1x4x256xf32, #tpu.memory_space<vmem>>, %arg4: memref<1x1x128xf32, #tpu.memory_space<vmem>>, %arg5: memref<1x4x128xf32, #tpu.memory_space<vmem>>, %arg6: memref<1x1x128xf32, #tpu.memory_space<vmem>>, %arg7: memref<4x128xf32, #tpu.memory_space<vmem>>) attributes {dimension_semantics = [#tpu.dimension_semantics<parallel>, #tpu.dimension_semantics<arbitrary>], iteration_bounds = array<i64: 2, 1>, scalar_prefetch = 0 : i64, scratch_operands = 1 : i64, tpu.core_type = #tpu.core_type<tc>, window_params = [{transform_indices = @transform_0, window_bounds = array<i64: 1, 128, 1>}, {transform_indices = @transform_1, window_bounds = array<i64: 1, 4, 256>}, {transform_indices = @transform_2, window_bounds = array<i64: 1, 1, 128>}, {transform_indices = @transform_3, window_bounds = array<i64: 1, 4, 128>}, {transform_indices = @transform_4, window_bounds = array<i64: 1, 1, 128>}]} {
    %c0_i32 = arith.constant 0 : i32
    %0 = arith.cmpi eq, %arg1, %c0_i32 : i32
    %1 = arith.extui %0 : i1 to i32
    %c0_i32_0 = arith.constant 0 : i32
    %2 = arith.cmpi ne, %1, %c0_i32_0 : i32
    scf.if %2 {
      %cst_12 = arith.constant 0.000000e+00 : f32
      %23 = vector.broadcast %cst_12 : f32 to vector<4x128xf32>
      %c0_13 = arith.constant 0 : index
      %c0_14 = arith.constant 0 : index
      %24 = vector.load %arg7[%c0_13, %c0_14] : memref<4x128xf32, #tpu.memory_space<vmem>>, vector<4x128xf32>
      tpu.vector_store %arg7[%c0_13, %c0_14], %23 {strides = array<i32>} : memref<4x128xf32, #tpu.memory_space<vmem>>, vector<4x128xf32>,
    } else {
    }
    %c0 = arith.constant 0 : index
    %c0_1 = arith.constant 0 : index
    %c0_2 = arith.constant 0 : index
    %3 = vector.load %arg2[%c0, %c0_1, %c0_2] : memref<1x128x1xi32, #tpu.memory_space<vmem>>, vector<1x128x1xi32>
    %4 = vector.shape_cast %3 : vector<1x128x1xi32> to vector<128x1xi32>
    %c256_i32 = arith.constant 256 : i32
    %5 = arith.muli %arg1, %c256_i32 : i32
    %6 = vector.broadcast %5 : i32 to vector<128x1xi32>
    %7 = arith.subi %4, %6 : vector<128x1xi32>
    %8 = tpu.iota {dimensions = array<i32: 1>} : vector<1x256xi32>
    %9 = vector.broadcast %8 : vector<1x256xi32> to vector<128x256xi32>
    %10 = vector.broadcast %7 : vector<128x1xi32> to vector<128x256xi32>
    %11 = arith.cmpi eq, %9, %10 : vector<128x256xi32>
    %12 = arith.extui %11 : vector<128x256xi1> to vector<128x256xi32>
    %13 = arith.sitofp %12 : vector<128x256xi32> to vector<128x256xf32>
    %c0_3 = arith.constant 0 : index
    %c0_4 = arith.constant 0 : index
    %14 = vector.load %arg7[%c0_3, %c0_4] : memref<4x128xf32, #tpu.memory_space<vmem>>, vector<4x128xf32>
    %c0_5 = arith.constant 0 : index
    %c0_6 = arith.constant 0 : index
    %c0_7 = arith.constant 0 : index
    %15 = vector.load %arg3[%c0_5, %c0_6, %c0_7] : memref<1x4x256xf32, #tpu.memory_space<vmem>>, vector<1x4x256xf32>
    %16 = vector.shape_cast %15 : vector<1x4x256xf32> to vector<4x256xf32>
    %cst = arith.constant dense<0.000000e+00> : vector<4x128xf32>
    %17 = tpu.matmul %16, %13, %cst {dimension_numbers = #tpu.dot_dimension_numbers<[1], [1], [0], [0], [0, 0, 1, 0], [], []>} : vector<4x256xf32>, vector<128x256xf32>, vector<4x128xf32> -> vector<4x128xf32>
    %18 = arith.addf %14, %17 : vector<4x128xf32>
    %c0_8 = arith.constant 0 : index
    %c0_9 = arith.constant 0 : index
    %19 = vector.load %arg7[%c0_8, %c0_9] : memref<4x128xf32, #tpu.memory_space<vmem>>, vector<4x128xf32>
    tpu.vector_store %arg7[%c0_8, %c0_9], %18 {strides = array<i32>} : memref<4x128xf32, #tpu.memory_space<vmem>>, vector<4x128xf32>,
    %c0_i32_10 = arith.constant 0 : i32
    %20 = arith.cmpi eq, %arg1, %c0_i32_10 : i32
    %21 = arith.extui %20 : i1 to i32
    %c0_i32_11 = arith.constant 0 : i32
    %22 = arith.cmpi ne, %21, %c0_i32_11 : i32
    scf.if %22 {
      %c0_12 = arith.constant 0 : index
      %c0_13 = arith.constant 0 : index
      %c0_14 = arith.constant 0 : index
      %23 = vector.load %arg4[%c0_12, %c0_13, %c0_14] : memref<1x1x128xf32, #tpu.memory_space<vmem>>, vector<1x1x128xf32>
      %24 = vector.shape_cast %23 : vector<1x1x128xf32> to vector<1x128xf32>
      %c0_15 = arith.constant 0 : index
      %c0_16 = arith.constant 0 : index
      %c0_17 = arith.constant 0 : index
      %25 = vector.load %arg5[%c0_15, %c0_16, %c0_17] : memref<1x4x128xf32, #tpu.memory_space<vmem>>, vector<1x4x128xf32>
      %26 = vector.shape_cast %25 : vector<1x4x128xf32> to vector<4x128xf32>
      %c0_18 = arith.constant 0 : index
      %c0_19 = arith.constant 0 : index
      %27 = vector.load %arg7[%c0_18, %c0_19] : memref<4x128xf32, #tpu.memory_space<vmem>>, vector<4x128xf32>
      %28 = arith.subf %27, %26 : vector<4x128xf32>
      %29 = math.absf %28 : vector<4x128xf32>
      %30 = vector.broadcast %24 : vector<1x128xf32> to vector<4x128xf32>
      %31 = arith.mulf %29, %30 : vector<4x128xf32>
      %cst_20 = arith.constant dense<0.000000e+00> : vector<128xf32>
      %32 = vector.multi_reduction <add>, %31, %cst_20 [0] : vector<4x128xf32> to vector<128xf32>
      %33 = vector.shape_cast %32 : vector<128xf32> to vector<1x128xf32>
      %c0_21 = arith.constant 0 : index
      %c0_22 = arith.constant 0 : index
      %c0_23 = arith.constant 0 : index
      %34 = vector.load %arg6[%c0_21, %c0_22, %c0_23] : memref<1x1x128xf32, #tpu.memory_space<vmem>>, vector<1x1x128xf32>
      %35 = vector.shape_cast %34 : vector<1x1x128xf32> to vector<1x128xf32>
      %36 = vector.shape_cast %33 : vector<1x128xf32> to vector<1x1x128xf32>
      tpu.vector_store %arg6[%c0_21, %c0_22, %c0_23], %36 {strides = array<i32>} : memref<1x1x128xf32, #tpu.memory_space<vmem>>, vector<1x1x128xf32>,
    } else {
    }
    return
  }
  func.func @transform_0(%arg0: i32, %arg1: i32) -> (i32, i32, i32) {
    %c0_i32 = arith.constant 0 : i32
    %c0_i32_0 = arith.constant 0 : i32
    %c0_i32_1 = arith.constant 0 : i32
    return %arg0, %c0_i32, %c0_i32_0 : i32, i32, i32
  }
  func.func @transform_1(%arg0: i32, %arg1: i32) -> (i32, i32, i32) {
    %c0_i32 = arith.constant 0 : i32
    %c0_i32_0 = arith.constant 0 : i32
    return %arg0, %c0_i32, %arg1 : i32, i32, i32
  }
  func.func @transform_2(%arg0: i32, %arg1: i32) -> (i32, i32, i32) {
    %c0_i32 = arith.constant 0 : i32
    %c0_i32_0 = arith.constant 0 : i32
    %c0_i32_1 = arith.constant 0 : i32
    return %arg0, %c0_i32, %c0_i32_0 : i32, i32, i32
  }
  func.func @transform_3(%arg0: i32, %arg1: i32) -> (i32, i32, i32) {
    %c0_i32 = arith.constant 0 : i32
    %c0_i32_0 = arith.constant 0 : i32
    %c0_i32_1 = arith.constant 0 : i32
    return %arg0, %c0_i32, %c0_i32_0 : i32, i32, i32
  }
  func.func @transform_4(%arg0: i32, %arg1: i32) -> (i32, i32, i32) {
    %c0_i32 = arith.constant 0 : i32
    %c0_i32_0 = arith.constant 0 : i32
    %c0_i32_1 = arith.constant 0 : i32
    return %arg0, %c0_i32, %c0_i32_0 : i32, i32, i32
  }
}

</mosaic_0001>

<llo_original>
// kernel: tpu_custom_call.1
$region0: #{tpu_custom_call.1}
  #allocation0 [shape = 'u32[]', space=smem, size = 0x4, offset = 0x4, fixed_abs, tag = 'smem constant byte address 0x4 - core index']
  #allocation1 [shape = 'u32[144,128]{1,0:T(1,128)}', space=vmem, size = 0x12000, scoped, tag = 'internal scratch']
  #allocation2 [shape = 'f32[4,128]{1,0:T(4,128)}', space=vmem, size = 0x800, scoped, tag = 'scratch operand']
  %s0 = inlined_call_operand.vmem [shape: s32[2,128,1], index: 0, kind: input, shape index: {}]
  %s1 = inlined_call_operand.vmem [shape: f32[2,4,256], index: 1, kind: input, shape index: {}]
  %s2 = inlined_call_operand.vmem [shape: f32[2,1,128], index: 2, kind: input, shape index: {}]
  %s3 = inlined_call_operand.vmem [shape: f32[2,4,128], index: 3, kind: input, shape index: {}]
  %s4 = inlined_call_operand.hbm [shape: f32[2,1,128], index: 4, kind: output, shape index: {}]
  %s5 = sld [smem:[#allocation0]]
  $region57: #{tpu_custom_call.1} parent=0
    _
  %s7 = ssub.s32 1, %s5
  %s8 = scalar_select 0, %s7, %s5
  $region1: #{tpu_custom_call.1} parent=0
    #allocation3 [shape = 'u8[1024]{0}', space=vmem, size = 0x400, scoped, tag = 'output window, operand 0']
    #allocation4 [shape = 's32[2]{0}', space=sflag, size = 0x8, scoped, tag = 'scoped memory for tpu_custom_call.1']
    %9 = vsyncpa [#allocation4], 0
    %s10 = scalar_lea.sflag [#allocation4], 1
    %11 = vsyncpa %s10, 0
    loop: start=0, step=1, limit=4
    $region2: #{tpu_custom_call.1} parent=1 // loop_pre_header
      _
    $region3: #{tpu_custom_call.1} parent=1 // loop_header
      %s13 = sphi 0, %s17
      %p14 = scmp.ge.s32.totalorder %s13, 4
      %s20 = sphi 0, %s32
      %s21 = sphi 0, %s28
      %s22 = sphi 0, %s20
      %s23 = sphi 0, %s21
      %s24 = sphi 0, %s22
      %s25 = sphi 0, %s23
      %s35 = sphi 0, %s37
      %s38 = sphi 0, %s35
      %s39 = sphi 0, %s38
      %s55 = sphi 0, %s39
      %s63 = sphi 0, %s65
      %s66 = sphi 0, %s63
      %s67 = sphi 0, %s66
      %s83 = sphi 0, %s67
      %s89 = sphi 0, %s91
      %s92 = sphi 0, %s89
      %s93 = sphi 0, %s92
      %s109 = sphi 0, %s93
      %s115 = sphi 0, %s117
      %s118 = sphi 0, %s115
      %s119 = sphi 0, %s118
      %s135 = sphi 0, %s119
      %s141 = sphi 0, %s143
      %s144 = sphi 0, %s141
      %s145 = sphi 0, %s144
      %s161 = sphi 0, %s145
    $region4: #{tpu_custom_call.1} parent=1 // loop_header_branch
      %16 = sbr.rel (%p14) target = $region8
    $region5: #{tpu_custom_call.1} parent=1 // loop_body
      %s18 = ssub.s32 %s13, 1
      %s19 = ssub.s32 %s13, 2
      %s26 = sadd.s32 1, %s21
      %p27 = scmp.ge.s32.totalorder %s26, 1
      %s28 = scalar_select %p27, 0, %s26
      %s29 = sadd.s32 1, %s20
      %s30 = scalar_select %p27, %s29, %s20
      %p31 = scmp.ge.s32.totalorder %s30, 2
      %s32 = scalar_select %p31, 0, %s30
      %s33 = ssub.s32 %s20, %s32
      %p34 = scmp.eq.s32.totalorder %s33, 0
      %s36 = sadd.s32 %s35, 1
      %s37 = scalar_select %p34, %s35, %s36
      %p40 = pneg %p34
      %p41 = scmp.eq.s32.totalorder %s13, 1
      %p42 = por %p40, %p41
      %p43 = scmp.ne.s32.totalorder %s35, %s38
      %p44 = scmp.eq.s32.totalorder %s13, 0
      %p45 = por %p43, %p44
      %p46 = scmp.ne.s32.totalorder %s35, %s38
      %p47 = scmp.eq.s32.totalorder %s18, 1
      %p48 = por %p46, %p47
      %p49 = scmp.ne.s32.totalorder %s38, %s39
      %p50 = scmp.eq.s32.totalorder %s18, 0
      %p51 = por %p49, %p50
      %p52 = scmp.ne.s32.totalorder %s38, %s39
      %p53 = scmp.eq.s32.totalorder %s19, 1
      %p54 = por %p52, %p53
      %p56 = scmp.ne.s32.totalorder %s39, %s55
      %p57 = scmp.eq.s32.totalorder %s19, 0
      %p58 = por %p56, %p57
      %s59 = ssub.s32 %s20, %s32
      %s60 = ssub.s32 %s21, %s28
      %s61 = sor.u32 %s59, %s60
      %p62 = scmp.eq.s32.totalorder %s61, 0
      %s64 = sadd.s32 %s63, 1
      %s65 = scalar_select %p62, %s63, %s64
      %p68 = pneg %p62
      %p69 = scmp.eq.s32.totalorder %s13, 1
      %p70 = por %p68, %p69
      %p71 = scmp.ne.s32.totalorder %s63, %s66
      %p72 = scmp.eq.s32.totalorder %s13, 0
      %p73 = por %p71, %p72
      %p74 = scmp.ne.s32.totalorder %s63, %s66
      %p75 = scmp.eq.s32.totalorder %s18, 1
      %p76 = por %p74, %p75
      %p77 = scmp.ne.s32.totalorder %s66, %s67
      %p78 = scmp.eq.s32.totalorder %s18, 0
      %p79 = por %p77, %p78
      %p80 = scmp.ne.s32.totalorder %s66, %s67
      %p81 = scmp.eq.s32.totalorder %s19, 1
      %p82 = por %p80, %p81
      %p84 = scmp.ne.s32.totalorder %s67, %s83
      %p85 = scmp.eq.s32.totalorder %s19, 0
      %p86 = por %p84, %p85
      %s87 = ssub.s32 %s20, %s32
      %p88 = scmp.eq.s32.totalorder %s87, 0
      %s90 = sadd.s32 %s89, 1
      %s91 = scalar_select %p88, %s89, %s90
      %p94 = pneg %p88
      %p95 = scmp.eq.s32.totalorder %s13, 1
      %p96 = por %p94, %p95
      %p97 = scmp.ne.s32.totalorder %s89, %s92
      %p98 = scmp.eq.s32.totalorder %s13, 0
      %p99 = por %p97, %p98
      %p100 = scmp.ne.s32.totalorder %s89, %s92
      %p101 = scmp.eq.s32.totalorder %s18, 1
      %p102 = por %p100, %p101
      %p103 = scmp.ne.s32.totalorder %s92, %s93
      %p104 = scmp.eq.s32.totalorder %s18, 0
      %p105 = por %p103, %p104
      %p106 = scmp.ne.s32.totalorder %s92, %s93
      %p107 = scmp.eq.s32.totalorder %s19, 1
      %p108 = por %p106, %p107
      %p110 = scmp.ne.s32.totalorder %s93, %s109
      %p111 = scmp.eq.s32.totalorder %s19, 0
      %p112 = por %p110, %p111
      %s113 = ssub.s32 %s20, %s32
      %p114 = scmp.eq.s32.totalorder %s113, 0
      %s116 = sadd.s32 %s115, 1
      %s117 = scalar_select %p114, %s115, %s116
      %p120 = pneg %p114
      %p121 = scmp.eq.s32.totalorder %s13, 1
      %p122 = por %p120, %p121
      %p123 = scmp.ne.s32.totalorder %s115, %s118
      %p124 = scmp.eq.s32.totalorder %s13, 0
      %p125 = por %p123, %p124
      %p126 = scmp.ne.s32.totalorder %s115, %s118
      %p127 = scmp.eq.s32.totalorder %s18, 1
      %p128 = por %p126, %p127
      %p129 = scmp.ne.s32.totalorder %s118, %s119
      %p130 = scmp.eq.s32.totalorder %s18, 0
      %p131 = por %p129, %p130
      %p132 = scmp.ne.s32.totalorder %s118, %s119
      %p133 = scmp.eq.s32.totalorder %s19, 1
      %p134 = por %p132, %p133
      %p136 = scmp.ne.s32.totalorder %s119, %s135
      %p137 = scmp.eq.s32.totalorder %s19, 0
      %p138 = por %p136, %p137
      %s139 = ssub.s32 %s20, %s32
      %p140 = scmp.eq.s32.totalorder %s139, 0
      %s142 = sadd.s32 %s141, 1
      %s143 = scalar_select %p140, %s141, %s142
      %p146 = pneg %p140
      %p147 = scmp.eq.s32.totalorder %s13, 1
      %p148 = por %p146, %p147
      %p149 = scmp.ne.s32.totalorder %s141, %s144
      %p150 = scmp.eq.s32.totalorder %s13, 0
      %p151 = por %p149, %p150
      %p152 = scmp.ne.s32.totalorder %s141, %s144
      %p153 = scmp.eq.s32.totalorder %s18, 1
      %p154 = por %p152, %p153
      %p155 = scmp.ne.s32.totalorder %s144, %s145
      %p156 = scmp.eq.s32.totalorder %s18, 0
      %p157 = por %p155, %p156
      %p158 = scmp.ne.s32.totalorder %s144, %s145
      %p159 = scmp.eq.s32.totalorder %s19, 1
      %p160 = por %p158, %p159
      %p162 = scmp.ne.s32.totalorder %s145, %s161
      %p163 = scmp.eq.s32.totalorder %s19, 0
      %p164 = por %p162, %p163
      %p165 = scmp.le.s32.totalorder 1, %s13
      %p166 = scmp.lt.s32.totalorder %s13, 3
      %p167 = pnand %p165, %p166
      %p168 = pneg %p167
      // Predicated region
      $region9: #{tpu_custom_call.1} parent=5 // pred_check
        _
      $region10: #{tpu_custom_call.1} parent=5 // pred_check_branch
        %170 = sbr.rel (%p167) target = $region12
      $region11: #{tpu_custom_call.1} parent=5 // pred_region
        %s171 = ssub.s32 %s13, 1
      $region12: #{tpu_custom_call.1} parent=5 // pred_fallthru
        _
      %p172 = scmp.lt.s32.totalorder %s13, 2
      // Predicated region
      $region13: #{tpu_custom_call.1} parent=5 // pred_check
        %p173 = pneg %p172
      $region14: #{tpu_custom_call.1} parent=5 // pred_check_branch
        %175 = sbr.rel (%p173) target = $region16
      $region15: #{tpu_custom_call.1} parent=5 // pred_region
        // Predicated region
        $region17: #{tpu_custom_call.1} parent=15 // pred_check
          %p176 = pneg %p45
        $region18: #{tpu_custom_call.1} parent=15 // pred_check_branch
          %178 = sbr.rel (%p176) target = $region20
        $region19: #{tpu_custom_call.1} parent=15 // pred_region
          %p179 = scmp.lt.s32.totalorder %s20, 1
          %s180 = scalar_select %p179, %s20, 1
          %s181 = smul.addr %s180, 16
          %s182 = smul.addr %s181, 8
          %s183 = scalar_lea.vmem %s0, %s182
        $region20: #{tpu_custom_call.1} parent=15 // pred_fallthru
          _
        // Predicated region
        $region21: #{tpu_custom_call.1} parent=15 // pred_check
          %p184 = pneg %p73
        $region22: #{tpu_custom_call.1} parent=15 // pred_check_branch
          %186 = sbr.rel (%p184) target = $region24
        $region23: #{tpu_custom_call.1} parent=15 // pred_region
          %s187 = smul.u32 2, %s21
          %p188 = scmp.lt.s32.totalorder %s20, 1
          %s189 = scalar_select %p188, %s20, 1
          %p190 = scmp.lt.s32.totalorder %s187, 1
          %s191 = scalar_select %p190, %s187, 1
          %s192 = smul.addr %s189, 2
          %s193 = sadd.s32 %s191, %s192
          %s194 = smul.addr %s193, 4
          %s195 = scalar_lea.vmem %s1, %s194
          %s196 = smul.u32 2, %s21
        $region24: #{tpu_custom_call.1} parent=15 // pred_fallthru
          _
        // Predicated region
        $region25: #{tpu_custom_call.1} parent=15 // pred_check
          %p197 = pneg %p99
        $region26: #{tpu_custom_call.1} parent=15 // pred_check_branch
          %199 = sbr.rel (%p197) target = $region28
        $region27: #{tpu_custom_call.1} parent=15 // pred_region
          %p200 = scmp.lt.s32.totalorder %s20, 1
          %s201 = scalar_select %p200, %s20, 1
          %s202 = scalar_lea.vmem %s2, %s201
        $region28: #{tpu_custom_call.1} parent=15 // pred_fallthru
          _
        // Predicated region
        $region29: #{tpu_custom_call.1} parent=15 // pred_check
          %p203 = pneg %p125
        $region30: #{tpu_custom_call.1} parent=15 // pred_check_branch
          %205 = sbr.rel (%p203) target = $region32
        $region31: #{tpu_custom_call.1} parent=15 // pred_region
          %p206 = scmp.lt.s32.totalorder %s20, 1
          %s207 = scalar_select %p206, %s20, 1
          %s208 = smul.addr %s207, 4
          %s209 = scalar_lea.vmem %s3, %s208
        $region32: #{tpu_custom_call.1} parent=15 // pred_fallthru
          _
      $region16: #{tpu_custom_call.1} parent=5 // pred_fallthru
        _
      %p210 = scmp.le.s32.totalorder 1, %s13
      %p211 = scmp.lt.s32.totalorder %s13, 3
      %p212 = pnand %p210, %p211
      %p213 = pneg %p212
      // Predicated region
      $region33: #{tpu_custom_call.1} parent=5 // pred_check
        _
      $region34: #{tpu_custom_call.1} parent=5 // pred_check_branch
        %215 = sbr.rel (%p212) target = $region36
      $region35: #{tpu_custom_call.1} parent=5 // pred_region
        %s216 = ssub.s32 %s13, 1
        %p217 = scmp.lt.s32.totalorder %s22, 1
        %s218 = scalar_select %p217, %s22, 1
        %s219 = smul.addr %s218, 16
        %s220 = smul.addr %s219, 8
        %s221 = scalar_lea.vmem %s0, %s220
        %p222 = pneg %p51
        %p223 = pneg %p48
        %s224 = smul.u32 2, %s23
        %p225 = scmp.lt.s32.totalorder %s22, 1
        %s226 = scalar_select %p225, %s22, 1
        %p227 = scmp.lt.s32.totalorder %s224, 1
        %s228 = scalar_select %p227, %s224, 1
        %s229 = smul.addr %s226, 2
        %s230 = sadd.s32 %s228, %s229
        %s231 = smul.addr %s230, 4
        %s232 = scalar_lea.vmem %s1, %s231
        %p233 = pneg %p79
        %p234 = pneg %p76
        %p235 = scmp.lt.s32.totalorder %s22, 1
        %s236 = scalar_select %p235, %s22, 1
        %s237 = scalar_lea.vmem %s2, %s236
        %p238 = pneg %p105
        %p239 = pneg %p102
        %p240 = scmp.lt.s32.totalorder %s22, 1
        %s241 = scalar_select %p240, %s22, 1
        %s242 = smul.addr %s241, 4
        %s243 = scalar_lea.vmem %s3, %s242
        %p244 = pneg %p131
        %p245 = pneg %p128
        %p246 = pneg %p157
        %p247 = pneg %p154
        %s248 = sand.u32 %s144, 1
        %s249 = scalar_lea.sflag [#allocation4], %s248
        %s250 = sand.u32 %s144, 1
        %s251 = scalar_lea.vmem [#allocation3], %s250
        %p252 = scmp.lt.s32.totalorder %s22, 1
        %s253 = scalar_select %p252, %s22, 1
        %s254 = smul.addr %s253, 16
        %s255 = smul.addr %s254, 8
        %s256 = scalar_lea.vmem %s0, %s255
        %s257 = smul.u32 2, %s23
        %p258 = scmp.lt.s32.totalorder %s22, 1
        %s259 = scalar_select %p258, %s22, 1
        %p260 = scmp.lt.s32.totalorder %s257, 1
        %s261 = scalar_select %p260, %s257, 1
        %s262 = smul.addr %s259, 2
        %s263 = sadd.s32 %s261, %s262
        %s264 = smul.addr %s263, 4
        %s265 = scalar_lea.vmem %s1, %s264
        %s266 = smul.u32 2, %s23
        %p267 = scmp.lt.s32.totalorder %s22, 1
        %s268 = scalar_select %p267, %s22, 1
        %s269 = scalar_lea.vmem %s2, %s268
        %p270 = scmp.lt.s32.totalorder %s22, 1
        %s271 = scalar_select %p270, %s22, 1
        %s272 = smul.addr %s271, 4
        %s273 = scalar_lea.vmem %s3, %s272
        %p274 = scmp.eq.s32.totalorder %s23, 0
        // Predicated region
        $region37: #{tpu_custom_call.1} parent=35 // pred_check
          %p275 = pneg %p274
        $region38: #{tpu_custom_call.1} parent=35 // pred_check_branch
          %277 = sbr.rel (%p275) target = $region40
        $region39: #{tpu_custom_call.1} parent=35 // pred_region
          %278 = vst [vmem:[#allocation2] sm:$0xf] 0.0
        $region40: #{tpu_custom_call.1} parent=35 // pred_fallthru
          _
        %v279 = vld [vmem:[%s256] sm:$0xff]
        %v280 = vld [vmem:[%s256 + $0x8] sm:$0xff]
        %v281 = vld [vmem:[%s256 + $0x10] sm:$0xff]
        %v282 = vld [vmem:[%s256 + $0x18] sm:$0xff]
        %v283 = vld [vmem:[%s256 + $0x20] sm:$0xff]
        %v284 = vld [vmem:[%s256 + $0x28] sm:$0xff]
        %v285 = vld [vmem:[%s256 + $0x30] sm:$0xff]
        %v286 = vld [vmem:[%s256 + $0x38] sm:$0xff]
        %v287 = vld [vmem:[%s256 + $0x40] sm:$0xff]
        %v288 = vld [vmem:[%s256 + $0x48] sm:$0xff]
        %v289 = vld [vmem:[%s256 + $0x50] sm:$0xff]
        %v290 = vld [vmem:[%s256 + $0x58] sm:$0xff]
        %v291 = vld [vmem:[%s256 + $0x60] sm:$0xff]
        %v292 = vld [vmem:[%s256 + $0x68] sm:$0xff]
        %v293 = vld [vmem:[%s256 + $0x70] sm:$0xff]
        %v294 = vld [vmem:[%s256 + $0x78] sm:$0xff]
        %s295 = smul.u32 %s23, 256
        %v296 = vstv %s295
        %v297 = vsub.s32 %v279, %v296
        %v298 = vsub.s32 %v280, %v296
        %v299 = vsub.s32 %v281, %v296
        %v300 = vsub.s32 %v282, %v296
        %v301 = vsub.s32 %v283, %v296
        %v302 = vsub.s32 %v284, %v296
        %v303 = vsub.s32 %v285, %v296
        %v304 = vsub.s32 %v286, %v296
        %v305 = vsub.s32 %v287, %v296
        %v306 = vsub.s32 %v288, %v296
        %v307 = vsub.s32 %v289, %v296
        %v308 = vsub.s32 %v290, %v296
        %v309 = vsub.s32 %v291, %v296
        %v310 = vsub.s32 %v292, %v296
        %v311 = vsub.s32 %v293, %v296
        %v312 = vsub.s32 %v294, %v296
        %v313 = vlaneseq
        %v314 = vand.u32 %v313, 127
        %v315 = vadd.s32 %v314, 128
        %316 = vset.pattern.permute.xlu0 0
        %317 = vperm.xlu0 %316, %v297
        %v318 = vpop.permute.xlu0 %317
        %319 = vset.pattern.permute.xlu0 0
        %320 = vperm.xlu0 %319, %v298
        %v321 = vpop.permute.xlu0 %320
        %322 = vset.pattern.permute.xlu0 0
        %323 = vperm.xlu0 %322, %v299
        %v324 = vpop.permute.xlu0 %323
        %325 = vset.pattern.permute.xlu0 0
        %326 = vperm.xlu0 %325, %v300
        %v327 = vpop.permute.xlu0 %326
        %328 = vset.pattern.permute.xlu0 0
        %329 = vperm.xlu0 %328, %v301
        %v330 = vpop.permute.xlu0 %329
        %331 = vset.pattern.permute.xlu0 0
        %332 = vperm.xlu0 %331, %v302
        %v333 = vpop.permute.xlu0 %332
        %334 = vset.pattern.permute.xlu0 0
        %335 = vperm.xlu0 %334, %v303
        %v336 = vpop.permute.xlu0 %335
        %337 = vset.pattern.permute.xlu0 0
        %338 = vperm.xlu0 %337, %v304
        %v339 = vpop.permute.xlu0 %338
        %340 = vset.pattern.permute.xlu0 0
        %341 = vperm.xlu0 %340, %v305
        %v342 = vpop.permute.xlu0 %341
        %343 = vset.pattern.permute.xlu0 0
        %344 = vperm.xlu0 %343, %v306
        %v345 = vpop.permute.xlu0 %344
        %346 = vset.pattern.permute.xlu0 0
        %347 = vperm.xlu0 %346, %v307
        %v348 = vpop.permute.xlu0 %347
        %349 = vset.pattern.permute.xlu0 0
        %350 = vperm.xlu0 %349, %v308
        %v351 = vpop.permute.xlu0 %350
        %352 = vset.pattern.permute.xlu0 0
        %353 = vperm.xlu0 %352, %v309
        %v354 = vpop.permute.xlu0 %353
        %355 = vset.pattern.permute.xlu0 0
        %356 = vperm.xlu0 %355, %v310
        %v357 = vpop.permute.xlu0 %356
        %358 = vset.pattern.permute.xlu0 0
        %359 = vperm.xlu0 %358, %v311
        %v360 = vpop.permute.xlu0 %359
        %361 = vset.pattern.permute.xlu0 0
        %362 = vperm.xlu0 %361, %v312
        %v363 = vpop.permute.xlu0 %362
        %vm364 = vcmp.eq.s32.totalorder %v314, %v318
        %vm365 = vcmp.eq.s32.totalorder %v315, %v318
        %vm366 = vcmp.eq.s32.totalorder %v314, %v321
        %vm367 = vcmp.eq.s32.totalorder %v315, %v321
        %vm368 = vcmp.eq.s32.totalorder %v314, %v324
        %vm369 = vcmp.eq.s32.totalorder %v315, %v324
        %vm370 = vcmp.eq.s32.totalorder %v314, %v327
        %vm371 = vcmp.eq.s32.totalorder %v315, %v327
        %vm372 = vcmp.eq.s32.totalorder %v314, %v330
        %vm373 = vcmp.eq.s32.totalorder %v315, %v330
        %vm374 = vcmp.eq.s32.totalorder %v314, %v333
        %vm375 = vcmp.eq.s32.totalorder %v315, %v333
        %vm376 = vcmp.eq.s32.totalorder %v314, %v336
        %vm377 = vcmp.eq.s32.totalorder %v315, %v336
        %vm378 = vcmp.eq.s32.totalorder %v314, %v339
        %vm379 = vcmp.eq.s32.totalorder %v315, %v339
        %vm380 = vcmp.eq.s32.totalorder %v314, %v342
        %vm381 = vcmp.eq.s32.totalorder %v315, %v342
        %vm382 = vcmp.eq.s32.totalorder %v314, %v345
        %vm383 = vcmp.eq.s32.totalorder %v315, %v345
        %vm384 = vcmp.eq.s32.totalorder %v314, %v348
        %vm385 = vcmp.eq.s32.totalorder %v315, %v348
        %vm386 = vcmp.eq.s32.totalorder %v314, %v351
        %vm387 = vcmp.eq.s32.totalorder %v315, %v351
        %vm388 = vcmp.eq.s32.totalorder %v314, %v354
        %vm389 = vcmp.eq.s32.totalorder %v315, %v354
        %vm390 = vcmp.eq.s32.totalorder %v314, %v357
        %vm391 = vcmp.eq.s32.totalorder %v315, %v357
        %vm392 = vcmp.eq.s32.totalorder %v314, %v360
        %vm393 = vcmp.eq.s32.totalorder %v315, %v360
        %vm394 = vcmp.eq.s32.totalorder %v314, %v363
        %vm395 = vcmp.eq.s32.totalorder %v315, %v363
        %v396 = vsel %vm364, 1, 0
        %v397 = vsel %vm365, 1, 0
        %v398 = vsel %vm366, 1, 0
        %v399 = vsel %vm367, 1, 0
        %v400 = vsel %vm368, 1, 0
        %v401 = vsel %vm369, 1, 0
        %v402 = vsel %vm370, 1, 0
        %v403 = vsel %vm371, 1, 0
        %v404 = vsel %vm372, 1, 0
        %v405 = vsel %vm373, 1, 0
        %v406 = vsel %vm374, 1, 0
        %v407 = vsel %vm375, 1, 0
        %v408 = vsel %vm376, 1, 0
        %v409 = vsel %vm377, 1, 0
        %v410 = vsel %vm378, 1, 0
        %v411 = vsel %vm379, 1, 0
        %v412 = vsel %vm380, 1, 0
        %v413 = vsel %vm381, 1, 0
        %v414 = vsel %vm382, 1, 0
        %v415 = vsel %vm383, 1, 0
        %v416 = vsel %vm384, 1, 0
        %v417 = vsel %vm385, 1, 0
        %v418 = vsel %vm386, 1, 0
        %v419 = vsel %vm387, 1, 0
        %v420 = vsel %vm388, 1, 0
        %v421 = vsel %vm389, 1, 0
        %v422 = vsel %vm390, 1, 0
        %v423 = vsel %vm391, 1, 0
        %v424 = vsel %vm392, 1, 0
        %v425 = vsel %vm393, 1, 0
        %v426 = vsel %vm394, 1, 0
        %v427 = vsel %vm395, 1, 0
        %v428 = vcvt.s32.f32 %v396
        %v429 = vcvt.s32.f32 %v397
        %v430 = vcvt.s32.f32 %v398
        %v431 = vcvt.s32.f32 %v399
        %v432 = vcvt.s32.f32 %v400
        %v433 = vcvt.s32.f32 %v401
        %v434 = vcvt.s32.f32 %v402
        %v435 = vcvt.s32.f32 %v403
        %v436 = vcvt.s32.f32 %v404
        %v437 = vcvt.s32.f32 %v405
        %v438 = vcvt.s32.f32 %v406
        %v439 = vcvt.s32.f32 %v407
        %v440 = vcvt.s32.f32 %v408
        %v441 = vcvt.s32.f32 %v409
        %v442 = vcvt.s32.f32 %v410
        %v443 = vcvt.s32.f32 %v411
        %v444 = vcvt.s32.f32 %v412
        %v445 = vcvt.s32.f32 %v413
        %v446 = vcvt.s32.f32 %v414
        %v447 = vcvt.s32.f32 %v415
        %v448 = vcvt.s32.f32 %v416
        %v449 = vcvt.s32.f32 %v417
        %v450 = vcvt.s32.f32 %v418
        %v451 = vcvt.s32.f32 %v419
        %v452 = vcvt.s32.f32 %v420
        %v453 = vcvt.s32.f32 %v421
        %v454 = vcvt.s32.f32 %v422
        %v455 = vcvt.s32.f32 %v423
        %v456 = vcvt.s32.f32 %v424
        %v457 = vcvt.s32.f32 %v425
        %v458 = vcvt.s32.f32 %v426
        %v459 = vcvt.s32.f32 %v427
        %v460 = vld [vmem:[#allocation2] sm:$0xf]
        %v461 = vld [vmem:[%s265] sm:$0xff]
        %v463 = vcombine.high %v461, %v461
        %465 = vmatprep.subr.mxu0 %v429
        %466 = vmatpush1.xpose.msra.mxu0 %v428
        %467 = vmatprep.subr.mxu0 %v431
        %468 = vmatpush1.xpose.msra.mxu0 %v430
        %469 = vmatprep.subr.mxu0 %v433
        %470 = vmatpush1.xpose.msra.mxu0 %v432
        %471 = vmatprep.subr.mxu0 %v435
        %472 = vmatpush1.xpose.msra.mxu0 %v434
        %473 = vmatprep.subr.mxu0 %v437
        %474 = vmatpush1.xpose.msra.mxu0 %v436
        %475 = vmatprep.subr.mxu0 %v439
        %476 = vmatpush1.xpose.msra.mxu0 %v438
        %477 = vmatprep.subr.mxu0 %v441
        %478 = vmatpush1.xpose.msra.mxu0 %v440
        %479 = vmatprep.subr.mxu0 %v443
        %480 = vmatpush1.xpose.msra.mxu0 %v442
        %481 = vmatprep.subr.mxu0 %v445
        %482 = vmatpush1.xpose.msra.mxu0 %v444
        %483 = vmatprep.subr.mxu0 %v447
        %484 = vmatpush1.xpose.msra.mxu0 %v446
        %485 = vmatprep.subr.mxu0 %v449
        %486 = vmatpush1.xpose.msra.mxu0 %v448
        %487 = vmatprep.subr.mxu0 %v451
        %488 = vmatpush1.xpose.msra.mxu0 %v450
        %489 = vmatprep.subr.mxu0 %v453
        %490 = vmatpush1.xpose.msra.mxu0 %v452
        %491 = vmatprep.subr.mxu0 %v455
        %492 = vmatpush1.xpose.msra.mxu0 %v454
        %493 = vmatprep.subr.mxu0 %v457
        %494 = vmatpush1.xpose.msra.mxu0 %v456
        %495 = vmatprep.subr.mxu0 %v459
        %496 = vmatpush1.xpose.msra.mxu0 %v458
        %497 = vmatprep.subr.mxu0 0.0
        %498 = vmatpush1.xpose.msra.mxu0 0.0
        %499 = vmatprep.subr.mxu0 0.0
        %500 = vmatpush1.xpose.msra.mxu0 0.0
        %501 = vmatprep.subr.mxu0 0.0
        %502 = vmatpush1.xpose.msra.mxu0 0.0
        %503 = vmatprep.subr.mxu0 0.0
        %504 = vmatpush1.xpose.msra.mxu0 0.0
        %505 = vmatprep.subr.mxu0 0.0
        %506 = vmatpush1.xpose.msra.mxu0 0.0
        %507 = vmatprep.subr.mxu0 0.0
        %508 = vmatpush1.xpose.msra.mxu0 0.0
        %509 = vmatprep.subr.mxu0 0.0
        %510 = vmatpush1.xpose.msra.mxu0 0.0
        %511 = vmatprep.subr.mxu0 0.0
        %512 = vmatpush1.xpose.msra.mxu0 0.0
        %513 = vmatprep.subr.mxu0 0.0
        %514 = vmatpush1.xpose.msra.mxu0 0.0
        %515 = vmatprep.subr.mxu0 0.0
        %516 = vmatpush1.xpose.msra.mxu0 0.0
        %517 = vmatprep.subr.mxu0 0.0
        %518 = vmatpush1.xpose.msra.mxu0 0.0
        %519 = vmatprep.subr.mxu0 0.0
        %520 = vmatpush1.xpose.msra.mxu0 0.0
        %521 = vmatprep.subr.mxu0 0.0
        %522 = vmatpush1.xpose.msra.mxu0 0.0
        %523 = vmatprep.subr.mxu0 0.0
        %524 = vmatpush1.xpose.msra.mxu0 0.0
        %525 = vmatprep.subr.mxu0 0.0
        %526 = vmatpush1.xpose.msra.mxu0 0.0
        %527 = vmatprep.subr.mxu0 0.0
        %528 = vmatpush1.xpose.msra.mxu0 0.0
        %529 = vmatprep.mubr.f32.mxu0 %v463
        %530 = vmatmul.mubr.f32.gmra.mrb[0].mxu0 %v461
        %v531 = vpop.f32.mrb[0].mxu0
        %v532 = vadd.f32 0.0, %v531
        %v533 = vpop.f32.mrb[0].mxu0
        %534 = vdwg.mxu0
        %v535 = vadd.f32 %v460, %v532
        %536 = vst [vmem:[#allocation2] sm:$0xf] %v535
        // Predicated region
        $region41: #{tpu_custom_call.1} parent=35 // pred_check
          %p537 = pneg %p274
        $region42: #{tpu_custom_call.1} parent=35 // pred_check_branch
          %539 = sbr.rel (%p537) target = $region44
        $region43: #{tpu_custom_call.1} parent=35 // pred_region
          %v540 = vld [vmem:[%s269] sm:$0x1]
          %v541 = vld [vmem:[%s273] sm:$0xf]
          %v542 = vld [vmem:[#allocation2] sm:$0xf]
          %v543 = vsub.f32 %v542, %v541
          %v544 = vand.u32 2147483647, %v543
          %v546 = vlaneseq
          %v547 = vshrl.u32 %v546, 7
          %v548 = vsub.s32 0, %v547
          %v549 = vrot.slane %v540, %v548
          %v551 = vmul.f32 %v544, %v549
          %vm552 = vcmask 1043456
          %v553 = vsel %vm552, %v551, 0.0
          %v554 = vrot.slane %v553, 4
          %v555 = vadd.f32 %v553, %v554
          %v556 = vrot.slane %v555, 2
          %v557 = vadd.f32 %v555, %v556
          %v558 = vrot.slane %v557, 1
          %v559 = vadd.f32 %v557, %v558
          %560 = vst [vmem:[%s251] sm:$0x1] %v559
        $region44: #{tpu_custom_call.1} parent=35 // pred_fallthru
          _
        %s561 = sand.u32 %s144, 1
        %s562 = scalar_lea.sflag [#allocation4], %s561
        %s563 = sand.u32 %s144, 1
        %s564 = scalar_lea.vmem [#allocation3], %s563
        // Predicated region
        $region45: #{tpu_custom_call.1} parent=35 // pred_check
          %p565 = pneg %p154
        $region46: #{tpu_custom_call.1} parent=35 // pred_check_branch
          %567 = sbr.rel (%p565) target = $region48
        $region47: #{tpu_custom_call.1} parent=35 // pred_region
          %s569 = ssub.s32 16, 16
          %570 = vsyncadd %s562, %s569
          %s571 = smul.addr %s22, 16
          %s572 = scalar_lea.hbm %s4, %s571
          %s574 = sshll.u32 %s564, 4
          %s575 = int_to_ptr.vmem [resolvable:$true] %s574
          %577 = dma.vmem_to_hbm [thread:$0]  %s575, 16, %s572, %s562
        $region48: #{tpu_custom_call.1} parent=35 // pred_fallthru
          _
      $region36: #{tpu_custom_call.1} parent=5 // pred_fallthru
        _
      %p578 = scmp.le.s32.totalorder 2, %s13
      // Predicated region
      $region49: #{tpu_custom_call.1} parent=5 // pred_check
        %p579 = pneg %p578
      $region50: #{tpu_custom_call.1} parent=5 // pred_check_branch
        %581 = sbr.rel (%p579) target = $region52
      $region51: #{tpu_custom_call.1} parent=5 // pred_region
        %s582 = ssub.s32 %s13, 2
        // Predicated region
        $region53: #{tpu_custom_call.1} parent=51 // pred_check
          %p583 = pneg %p160
        $region54: #{tpu_custom_call.1} parent=51 // pred_check_branch
          %585 = sbr.rel (%p583) target = $region56
        $region55: #{tpu_custom_call.1} parent=51 // pred_region
          %s586 = sand.u32 %s145, 1
          %s587 = scalar_lea.sflag [#allocation4], %s586
          %s588 = sand.u32 %s145, 1
          %s589 = scalar_lea.vmem [#allocation3], %s588
          %590 = dma.done %s587, 16
        $region56: #{tpu_custom_call.1} parent=51 // pred_fallthru
          _
      $region52: #{tpu_custom_call.1} parent=5 // pred_fallthru
        _
    $region6: #{tpu_custom_call.1} parent=1 // loop_footer
      %s17 = sadd.s32 1, %s13
    $region7: #{tpu_custom_call.1} parent=1 // loop_footer_branch
      %12 = sbr.rel target = $region3
    $region8: #{tpu_custom_call.1} parent=1 // loop_exit
      _
    %591 = vsyncpa [#allocation4], 1
    %s592 = scalar_lea.sflag [#allocation4], 1
    %593 = vsyncpa %s592, 1

</llo_original>
